<compile_context>
chip_gen: v7x
topology: tpu7x:2x2x1
jax: 0.10.0
libtpu: 0.0.40
codegen_flags: <defaults>
</compile_context>

<pallas_src>
import functools

import jax
import jax.numpy as jnp
from jax.experimental import pallas as pl
from jax.experimental.pallas import tpu as pltpu

EPS = 1e-9


def _hdr_loss_kernel(logits_ref, targets_ref, out_ref, *, lambda_hdr, m_idx):
    x = logits_ref[...].astype(jnp.float32)          # [S, B, C] head-major
    tgt = targets_ref[...]                           # [B, 1] int32
    S, B, C = x.shape

    class_iota = jax.lax.broadcasted_iota(jnp.int32, (B, C), 1)        # [B,C]
    onehot = (class_iota == tgt).astype(jnp.float32)                   # [B,C]

    # ---- per-head softmax pieces over classes, all heads at once -----------
    mx = jnp.max(x, axis=-1, keepdims=True)                            # [S,B,1]
    z = x - mx
    ez = jnp.exp(z)
    sumexp = jnp.sum(ez, axis=-1, keepdims=True)                       # [S,B,1]
    probs = ez * pl.reciprocal(sumexp)        # exact rcp + mul (no full-tensor div)
    log_sumexp = jnp.log(sumexp)                                       # [S,B,1]

    # ---- task loss: CE = logsumexp - z[target]; mean over heads & batch ----
    z_tgt = jnp.sum(z * onehot[None, :, :], axis=-1, keepdims=True)    # [S,B,1]
    task_loss = jnp.sum(log_sumexp - z_tgt) * (1.0 / (S * B))

    # ---- budget modifier from the ensemble (mean of head logits) -----------
    ens = jnp.sum(x, axis=0) * (1.0 / S)                               # [B,C]
    ze = ens - jnp.max(ens, axis=-1, keepdims=True)
    lse_e = jnp.log(jnp.sum(jnp.exp(ze), axis=-1, keepdims=True))      # [B,1]
    ze_tgt = jnp.sum(ze * onehot, axis=-1, keepdims=True)              # [B,1]
    ce_ens = lse_e - ze_tgt                                            # [B,1]
    mean_ce = jnp.sum(ce_ens) * (1.0 / B)
    modifier = ce_ens * (1.0 / (mean_ce * mean_ce))                    # [B,1]

    # ---- A2D repulsion loss, vectorized over heads (fixed m_idx) -----------
    iota_c = jax.lax.broadcasted_iota(jnp.int32, (S, B, C), 2)         # [S,B,C]
    p2 = probs[m_idx]                                                  # [B,C]
    p1 = jnp.max(probs, axis=-1, keepdims=True)                        # [S,B,1]
    # first index attaining the max (matches torch.max / jnp.argmax ties)
    idx = jnp.min(jnp.where(probs == p1, iota_c, C),
                  axis=-1, keepdims=True)                              # [S,B,1]
    first = (iota_c == idx).astype(jnp.float32)                        # [S,B,C]
    p2_sel = jnp.sum(first * p2[None, :, :], axis=-1, keepdims=True)   # [S,B,1]
    # p1*(1-p2) + p2*(1-p1) == p1 + p2 - 2*p1*p2
    cross = p1 * p2_sel
    al = -jnp.log(p1 + p2_sel - (cross + cross) + EPS)                 # [S,B,1]
    # drop the m_idx head (its al is finite) and average the remaining S-1
    repulsion = (jnp.sum(al, axis=0) - al[m_idx]) * (1.0 / (S - 1))    # [B,1]

    total = (0.5 * task_loss
             + (lambda_hdr * 0.5 / B) * jnp.sum(repulsion * modifier))
    out_ref[0, 0] = total


def hdr_loss(logits, targets, lambda_hdr, m_idx=0):
    """logits: [B, S, C] float, targets: [B] int class indices -> scalar loss."""
    B, S, C = logits.shape
    assert S >= 2, "A2D repulsion loss needs at least 2 heads"
    # Head-major layout plumbing only; dtype passes through unchanged and is
    # cast to f32 after the HBM->VMEM load inside the kernel.
    logits_hm = jnp.transpose(logits, (1, 0, 2))       # [S, B, C]
    targets_2d = targets.astype(jnp.int32).reshape(B, 1)
    kernel = functools.partial(
        _hdr_loss_kernel, lambda_hdr=float(lambda_hdr), m_idx=int(m_idx))
    out = pl.pallas_call(
        kernel,
        out_shape=jax.ShapeDtypeStruct((1, 1), jnp.float32),
        in_specs=[
            pl.BlockSpec(memory_space=pltpu.MemorySpace.VMEM),
            pl.BlockSpec(memory_space=pltpu.MemorySpace.VMEM),
        ],
        out_specs=pl.BlockSpec(memory_space=pltpu.MemorySpace.SMEM),
    )(logits_hm, targets_2d)
    return out[0, 0]


def hdr_loss_ref(logits, targets, lambda_hdr, m_idx=0):
    """Pure-JAX reference mirroring the PyTorch forward (fixed m_idx)."""
    B, S, C = logits.shape
    logits = logits.astype(jnp.float32)
    onehot = jax.nn.one_hot(targets, C, dtype=jnp.float32)             # [B,C]
    logprobs = jax.nn.log_softmax(logits, axis=-1)                     # [B,S,C]
    probs = jax.nn.softmax(logits, axis=-1)                            # [B,S,C]
    task = jnp.mean(-jnp.sum(logprobs * onehot[:, None, :], axis=-1))
    ens = jnp.mean(logits, axis=1)                                     # [B,C]
    ce_ens = -jnp.sum(jax.nn.log_softmax(ens, -1) * onehot, axis=-1)   # [B]
    modifier = ce_ens / jnp.mean(ce_ens) ** 2
    p2 = probs[:, m_idx, :]
    als = []
    for i in range(S):
        if i == m_idx:
            continue
        pi = probs[:, i, :]
        p1 = jnp.max(pi, axis=-1)
        idx = jnp.argmax(pi, axis=-1)
        p2s = p2[jnp.arange(B), idx]
        als.append(-jnp.log(p1 * (1.0 - p2s) + p2s * (1.0 - p1) + EPS))
    repulsion = jnp.mean(jnp.stack(als), axis=0)                       # [B]
    return 0.5 * task + lambda_hdr * 0.5 * jnp.mean(repulsion * modifier)


if __name__ == "__main__":
    B, S, C = 8, 4, 16          # batch, heads, classes
    lambda_hdr = 2.0            # module __init__ parameter (deterministic)

    key = jax.random.PRNGKey(0)
    k_logits, k_tgt = jax.random.split(key)
    logits = jax.random.normal(k_logits, (B, S, C), dtype=jnp.float32)
    targets = jax.random.randint(k_tgt, (B,), 0, C, dtype=jnp.int32)

    out = hdr_loss(logits, targets, lambda_hdr)
    out = jax.block_until_ready(out)

    ref = hdr_loss_ref(logits, targets, lambda_hdr)
    assert jnp.allclose(out, ref, rtol=1e-5, atol=1e-5), (out, ref)
    print("KERNEL_OK")
</pallas_src>

<mosaic_0001>
module attributes {stable_mosaic.version = 11 : i64} {
  func.func @_hdr_loss_kernel(%arg0: memref<4x8x16xf32, #tpu.memory_space<vmem>>, %arg1: memref<8x1xi32, #tpu.memory_space<vmem>>, %arg2: memref<1x1xf32, #tpu.memory_space<smem>>) attributes {dimension_semantics = [], scalar_prefetch = 0 : i64, scratch_operands = 0 : i64, tpu.core_type = #tpu.core_type<tc>} {
    %c0 = arith.constant 0 : index
    %c0_0 = arith.constant 0 : index
    %c0_1 = arith.constant 0 : index
    %0 = vector.load %arg0[%c0, %c0_0, %c0_1] : memref<4x8x16xf32, #tpu.memory_space<vmem>>, vector<4x8x16xf32>
    %c0_2 = arith.constant 0 : index
    %c0_3 = arith.constant 0 : index
    %1 = vector.load %arg1[%c0_2, %c0_3] : memref<8x1xi32, #tpu.memory_space<vmem>>, vector<8x1xi32>
    %2 = tpu.iota {dimensions = array<i32: 1>} : vector<8x16xi32>
    %3 = vector.broadcast %1 : vector<8x1xi32> to vector<8x16xi32>
    %4 = arith.cmpi eq, %2, %3 : vector<8x16xi32>
    %5 = arith.extui %4 : vector<8x16xi1> to vector<8x16xi32>
    %6 = arith.sitofp %5 : vector<8x16xi32> to vector<8x16xf32>
    %cst = arith.constant dense<0xFF800000> : vector<4x8xf32>
    %7 = vector.multi_reduction <maximumf>, %0, %cst [2] : vector<4x8x16xf32> to vector<4x8xf32>
    %8 = vector.shape_cast %7 : vector<4x8xf32> to vector<4x8x1xf32>
    %9 = vector.broadcast %8 : vector<4x8x1xf32> to vector<4x8x16xf32>
    %10 = arith.subf %0, %9 : vector<4x8x16xf32>
    %11 = math.exp %10 : vector<4x8x16xf32>
    %cst_4 = arith.constant dense<0.000000e+00> : vector<4x8xf32>
    %12 = vector.multi_reduction <add>, %11, %cst_4 [2] : vector<4x8x16xf32> to vector<4x8xf32>
    %13 = vector.shape_cast %12 : vector<4x8xf32> to vector<4x8x1xf32>
    %14 = tpu.reciprocal %13 : vector<4x8x1xf32> -> vector<4x8x1xf32>
    %15 = vector.broadcast %14 : vector<4x8x1xf32> to vector<4x8x16xf32>
    %16 = arith.mulf %11, %15 : vector<4x8x16xf32>
    %17 = math.log %13 : vector<4x8x1xf32>
    %18 = vector.shape_cast %6 : vector<8x16xf32> to vector<1x8x16xf32>
    %19 = vector.broadcast %18 : vector<1x8x16xf32> to vector<4x8x16xf32>
    %20 = arith.mulf %10, %19 : vector<4x8x16xf32>
    %cst_5 = arith.constant dense<0.000000e+00> : vector<4x8xf32>
    %21 = vector.multi_reduction <add>, %20, %cst_5 [2] : vector<4x8x16xf32> to vector<4x8xf32>
    %22 = vector.shape_cast %21 : vector<4x8xf32> to vector<4x8x1xf32>
    %23 = arith.subf %17, %22 : vector<4x8x1xf32>
    %24 = vector.shape_cast %23 : vector<4x8x1xf32> to vector<1x4x8x1xf32>
    %cst_6 = arith.constant dense<0.000000e+00> : vector<1xf32>
    %25 = vector.multi_reduction <add>, %24, %cst_6 [1, 2, 3] : vector<1x4x8x1xf32> to vector<1xf32>
    %26 = vector.shape_cast %25 : vector<1xf32> to vector<1x1x1x1xf32>
    %27 = vector.extract %26[0, 0, 0, 0] : f32 from vector<1x1x1x1xf32>
    %cst_7 = arith.constant 3.125000e-02 : f32
    %28 = arith.mulf %27, %cst_7 : f32
    %cst_8 = arith.constant dense<0.000000e+00> : vector<8x16xf32>
    %29 = vector.multi_reduction <add>, %0, %cst_8 [0] : vector<4x8x16xf32> to vector<8x16xf32>
    %cst_9 = arith.constant 2.500000e-01 : f32
    %30 = vector.broadcast %cst_9 : f32 to vector<8x16xf32>
    %31 = arith.mulf %29, %30 : vector<8x16xf32>
    %cst_10 = arith.constant dense<0xFF800000> : vector<8xf32>
    %32 = vector.multi_reduction <maximumf>, %31, %cst_10 [1] : vector<8x16xf32> to vector<8xf32>
    %33 = vector.shape_cast %32 : vector<8xf32> to vector<8x1xf32>
    %34 = vector.broadcast %33 : vector<8x1xf32> to vector<8x16xf32>
    %35 = arith.subf %31, %34 : vector<8x16xf32>
    %36 = math.exp %35 : vector<8x16xf32>
    %cst_11 = arith.constant dense<0.000000e+00> : vector<8xf32>
    %37 = vector.multi_reduction <add>, %36, %cst_11 [1] : vector<8x16xf32> to vector<8xf32>
    %38 = vector.shape_cast %37 : vector<8xf32> to vector<8x1xf32>
    %39 = math.log %38 : vector<8x1xf32>
    %40 = arith.mulf %35, %6 : vector<8x16xf32>
    %cst_12 = arith.constant dense<0.000000e+00> : vector<8xf32>
    %41 = vector.multi_reduction <add>, %40, %cst_12 [1] : vector<8x16xf32> to vector<8xf32>
    %42 = vector.shape_cast %41 : vector<8xf32> to vector<8x1xf32>
    %43 = arith.subf %39, %42 : vector<8x1xf32>
    %44 = vector.shape_cast %43 : vector<8x1xf32> to vector<1x8x1xf32>
    %cst_13 = arith.constant dense<0.000000e+00> : vector<1xf32>
    %45 = vector.multi_reduction <add>, %44, %cst_13 [1, 2] : vector<1x8x1xf32> to vector<1xf32>
    %46 = vector.shape_cast %45 : vector<1xf32> to vector<1x1x1xf32>
    %47 = vector.extract %46[0, 0, 0] : f32 from vector<1x1x1xf32>
    %cst_14 = arith.constant 1.250000e-01 : f32
    %48 = arith.mulf %47, %cst_14 : f32
    %49 = arith.mulf %48, %48 : f32
    %cst_15 = arith.constant 1.000000e+00 : f32
    %50 = arith.divf %cst_15, %49 : f32
    %51 = vector.broadcast %50 : f32 to vector<8x1xf32>
    %52 = arith.mulf %43, %51 : vector<8x1xf32>
    %53 = tpu.iota {dimensions = array<i32: 2>} : vector<4x8x16xi32>
    %54 = vector.extract_strided_slice %16 {offsets = [0, 0, 0], sizes = [1, 8, 16], strides = [1, 1, 1]} : vector<4x8x16xf32> to vector<1x8x16xf32>
    %55 = vector.shape_cast %54 : vector<1x8x16xf32> to vector<8x16xf32>
    %cst_16 = arith.constant dense<0xFF800000> : vector<4x8xf32>
    %56 = vector.multi_reduction <maximumf>, %16, %cst_16 [2] : vector<4x8x16xf32> to vector<4x8xf32>
    %57 = vector.shape_cast %56 : vector<4x8xf32> to vector<4x8x1xf32>
    %58 = vector.broadcast %57 : vector<4x8x1xf32> to vector<4x8x16xf32>
    %59 = arith.cmpf oeq, %16, %58 : vector<4x8x16xf32>
    %c16_i32 = arith.constant 16 : i32
    %60 = vector.broadcast %c16_i32 : i32 to vector<4x8x16xi32>
    %61 = arith.select %59, %53, %60 : vector<4x8x16xi1>, vector<4x8x16xi32>
    %cst_17 = arith.constant dense<2147483647> : vector<4x8xi32>
    %62 = vector.multi_reduction <minsi>, %61, %cst_17 [2] : vector<4x8x16xi32> to vector<4x8xi32>
    %63 = vector.shape_cast %62 : vector<4x8xi32> to vector<4x8x1xi32>
    %64 = vector.broadcast %63 : vector<4x8x1xi32> to vector<4x8x16xi32>
    %65 = arith.cmpi eq, %53, %64 : vector<4x8x16xi32>
    %66 = arith.extui %65 : vector<4x8x16xi1> to vector<4x8x16xi32>
    %67 = arith.sitofp %66 : vector<4x8x16xi32> to vector<4x8x16xf32>
    %68 = vector.shape_cast %55 : vector<8x16xf32> to vector<1x8x16xf32>
    %69 = vector.broadcast %68 : vector<1x8x16xf32> to vector<4x8x16xf32>
    %70 = arith.mulf %67, %69 : vector<4x8x16xf32>
    %cst_18 = arith.constant dense<0.000000e+00> : vector<4x8xf32>
    %71 = vector.multi_reduction <add>, %70, %cst_18 [2] : vector<4x8x16xf32> to vector<4x8xf32>
    %72 = vector.shape_cast %71 : vector<4x8xf32> to vector<4x8x1xf32>
    %73 = arith.mulf %57, %72 : vector<4x8x1xf32>
    %74 = arith.addf %57, %72 : vector<4x8x1xf32>
    %75 = arith.addf %73, %73 : vector<4x8x1xf32>
    %76 = arith.subf %74, %75 : vector<4x8x1xf32>
    %cst_19 = arith.constant 9.99999971E-10 : f32
    %77 = vector.broadcast %cst_19 : f32 to vector<4x8x1xf32>
    %78 = arith.addf %76, %77 : vector<4x8x1xf32>
    %79 = math.log %78 : vector<4x8x1xf32>
    %cst_20 = arith.constant 0.000000e+00 : f32
    %80 = vector.broadcast %cst_20 : f32 to vector<4x8x1xf32>
    %81 = arith.subf %80, %79 : vector<4x8x1xf32>
    %cst_21 = arith.constant dense<0.000000e+00> : vector<8x1xf32>
    %82 = vector.multi_reduction <add>, %81, %cst_21 [0] : vector<4x8x1xf32> to vector<8x1xf32>
    %83 = vector.extract_strided_slice %81 {offsets = [0, 0, 0], sizes = [1, 8, 1], strides = [1, 1, 1]} : vector<4x8x1xf32> to vector<1x8x1xf32>
    %84 = vector.shape_cast %83 : vector<1x8x1xf32> to vector<8x1xf32>
    %85 = arith.subf %82, %84 : vector<8x1xf32>
    %cst_22 = arith.constant 0.333333343 : f32
    %86 = vector.broadcast %cst_22 : f32 to vector<8x1xf32>
    %87 = arith.mulf %85, %86 : vector<8x1xf32>
    %cst_23 = arith.constant 5.000000e-01 : f32
    %88 = arith.mulf %cst_23, %28 : f32
    %89 = arith.mulf %87, %52 : vector<8x1xf32>
    %90 = vector.shape_cast %89 : vector<8x1xf32> to vector<1x8x1xf32>
    %cst_24 = arith.constant dense<0.000000e+00> : vector<1xf32>
    %91 = vector.multi_reduction <add>, %90, %cst_24 [1, 2] : vector<1x8x1xf32> to vector<1xf32>
    %92 = vector.shape_cast %91 : vector<1xf32> to vector<1x1x1xf32>
    %93 = vector.extract %92[0, 0, 0] : f32 from vector<1x1x1xf32>
    %cst_25 = arith.constant 1.250000e-01 : f32
    %94 = arith.mulf %cst_25, %93 : f32
    %95 = arith.addf %88, %94 : f32
    %c0_26 = arith.constant 0 : index
    %c0_27 = arith.constant 0 : index
    %96 = memref.load %arg2[%c0_26, %c0_27] : memref<1x1xf32, #tpu.memory_space<smem>>
    memref.store %95, %arg2[%c0_26, %c0_27] : memref<1x1xf32, #tpu.memory_space<smem>>
    return
  }
}

</mosaic_0001>

<llo_original>
// kernel: tpu_custom_call.1
$region0: #{tpu_custom_call.1}
  #allocation0 [shape = 'u32[]', space=smem, size = 0x4, offset = 0x4, fixed_abs, tag = 'smem constant byte address 0x4 - core index']
  #allocation1 [shape = 'u32[144,128]{1,0:T(1,128)}', space=vmem, size = 0x12000, scoped, tag = 'internal scratch']
  %s0 = inlined_call_operand.hbm [shape: f32[4,8,16], index: 0, kind: input, shape index: {}]
  %s1 = inlined_call_operand.vmem [shape: s32[8,1], index: 1, kind: input, shape index: {}]
  %s2 = inlined_call_operand.hbm [shape: f32[1,1], index: 2, kind: output, shape index: {}]
  %s3 = sld [smem:[#allocation0]]
  $region22: #{tpu_custom_call.1} parent=0
    _
  %s5 = ssub.s32 1, %s3
  %s6 = scalar_select 0, %s5, %s3
  $region1: #{tpu_custom_call.1} parent=0
    #allocation2 [shape = 'u8[16384]{0}', space=vmem, size = 0x4000, scoped, tag = 'input window, operand 0, single buffered']
    #allocation3 [shape = 's32[1]{0}', space=sflag, size = 0x4, scoped, tag = 'scoped memory for tpu_custom_call.1']
    #allocation4 [shape = 's32[1]{0}', space=sflag, size = 0x4, scoped, tag = 'scoped memory for tpu_custom_call.1']
    #allocation5 [shape = 'u8[512]{0}', space=smem, size = 0x200, scoped, tag = 'output window, operand 0, single buffered']
    %7 = vsyncpa [#allocation3], 0
    %8 = vsyncpa [#allocation4], 0
    // Predicated region
    $region2: #{tpu_custom_call.1} parent=1 // pred_check
      _
    $region3: #{tpu_custom_call.1} parent=1 // pred_check_branch
      %10 = sbr.rel (0) target = $region5
    $region4: #{tpu_custom_call.1} parent=1 // pred_region
      %s12 = ssub.s32 512, 512
      %13 = vsyncadd [#allocation3], %s12
      %s14 = sshll.u32 [#allocation2], 4
      %s15 = int_to_ptr.vmem [resolvable:$true] %s14
      %20 = dma.hbm_to_vmem [thread:$0]  %s0, 512, %s15, [#allocation3], 128, 128, 8
    $region5: #{tpu_custom_call.1} parent=1 // pred_fallthru
      _
    // Predicated region
    $region6: #{tpu_custom_call.1} parent=1 // pred_check
      _
    $region7: #{tpu_custom_call.1} parent=1 // pred_check_branch
      %22 = sbr.rel (0) target = $region9
    $region8: #{tpu_custom_call.1} parent=1 // pred_region
      _
    $region9: #{tpu_custom_call.1} parent=1 // pred_fallthru
      _
    // Predicated region
    $region10: #{tpu_custom_call.1} parent=1 // pred_check
      _
    $region11: #{tpu_custom_call.1} parent=1 // pred_check_branch
      %24 = sbr.rel (0) target = $region13
    $region12: #{tpu_custom_call.1} parent=1 // pred_region
      %25 = dma.done [#allocation3], 512
    $region13: #{tpu_custom_call.1} parent=1 // pred_fallthru
      _
    %v26 = vld [vmem:[#allocation2] sm:$0xff]
    %v27 = vld [vmem:[#allocation2 + $0x8] sm:$0xff]
    %v28 = vld [vmem:[#allocation2 + $0x10] sm:$0xff]
    %v29 = vld [vmem:[#allocation2 + $0x18] sm:$0xff]
    %v30 = vld [vmem:[%s1] sm:$0xff]
    %v31 = vlaneseq
    %v32 = vand.u32 %v31, 127
    %33 = vset.pattern.permute.xlu0 0
    %34 = vperm.xlu0 %33, %v30
    %v35 = vpop.permute.xlu0 %34
    %vm36 = vcmp.eq.s32.totalorder %v32, %v35
    %v37 = vsel %vm36, 1, 0
    %v38 = vcvt.s32.f32 %v37
    %vm39 = vcmask 130048
    %v40 = vsel %vm39, %v26, -inf
    %41 = vmax.xlane.f32.xlu0 %v40
    %v42 = vpop.xlane.xlu0 %41
    %v43 = vsel %vm39, %v27, -inf
    %44 = vmax.xlane.f32.xlu0 %v43
    %v45 = vpop.xlane.xlu0 %44
    %v46 = vsel %vm39, %v28, -inf
    %47 = vmax.xlane.f32.xlu0 %v46
    %v48 = vpop.xlane.xlu0 %47
    %v49 = vsel %vm39, %v29, -inf
    %50 = vmax.xlane.f32.xlu0 %v49
    %v51 = vpop.xlane.xlu0 %50
    %v52 = vsub.f32 %v26, %v42
    %v53 = vsub.f32 %v27, %v45
    %v54 = vsub.f32 %v28, %v48
    %v55 = vsub.f32 %v29, %v51
    %v56 = vmul.f32 %v52, 1.442695
    %v57 = vpow.pop %v56
    %v58 = vmul.f32 %v53, 1.442695
    %v59 = vpow.pop %v58
    %v60 = vmul.f32 %v54, 1.442695
    %v61 = vpow.pop %v60
    %v62 = vmul.f32 %v55, 1.442695
    %v63 = vpow.pop %v62
    %v64 = vsel %vm39, %v57, 0.0
    %65 = vadd.xlane.f32.xlu0 %v64
    %v66 = vpop.xlane.xlu0 %65
    %v67 = vsel %vm39, %v59, 0.0
    %68 = vadd.xlane.f32.xlu0 %v67
    %v69 = vpop.xlane.xlu0 %68
    %v70 = vsel %vm39, %v61, 0.0
    %71 = vadd.xlane.f32.xlu0 %v70
    %v72 = vpop.xlane.xlu0 %71
    %v73 = vsel %vm39, %v63, 0.0
    %74 = vadd.xlane.f32.xlu0 %v73
    %v75 = vpop.xlane.xlu0 %74
    %v76 = vrcp.pop %v66
    %v77 = vrcp.pop %v69
    %v78 = vrcp.pop %v72
    %v79 = vrcp.pop %v75
    %v80 = vmul.f32 %v57, %v76
    %v81 = vmul.f32 %v59, %v77
    %v82 = vmul.f32 %v61, %v78
    %v83 = vmul.f32 %v63, %v79
    %v84 = vlog2.pop %v66
    %v85 = vmul.f32 %v84, 0.6931472
    %v86 = vlog2.pop %v69
    %v87 = vmul.f32 %v86, 0.6931472
    %v88 = vlog2.pop %v72
    %v89 = vmul.f32 %v88, 0.6931472
    %v90 = vlog2.pop %v75
    %v91 = vmul.f32 %v90, 0.6931472
    %v92 = vmul.f32 %v52, %v38
    %v93 = vmul.f32 %v53, %v38
    %v94 = vmul.f32 %v54, %v38
    %v95 = vmul.f32 %v55, %v38
    %v96 = vsel %vm39, %v92, 0.0
    %97 = vadd.xlane.f32.xlu0 %v96
    %v98 = vpop.xlane.xlu0 %97
    %v99 = vsel %vm39, %v93, 0.0
    %100 = vadd.xlane.f32.xlu0 %v99
    %v101 = vpop.xlane.xlu0 %100
    %v102 = vsel %vm39, %v94, 0.0
    %103 = vadd.xlane.f32.xlu0 %v102
    %v104 = vpop.xlane.xlu0 %103
    %v105 = vsel %vm39, %v95, 0.0
    %106 = vadd.xlane.f32.xlu0 %v105
    %v107 = vpop.xlane.xlu0 %106
    %v108 = vsub.f32 %v85, %v98
    %v109 = vsub.f32 %v87, %v101
    %v110 = vsub.f32 %v89, %v104
    %v111 = vsub.f32 %v91, %v107
    %vm112 = vcmask 7168
    %v113 = vsel %vm112, %v108, 0.0
    %v114 = vsel %vm112, %v109, 0.0
    %v115 = vadd.f32 %v113, %v114
    %v116 = vsel %vm112, %v110, 0.0
    %v117 = vadd.f32 %v115, %v116
    %v118 = vsel %vm112, %v111, 0.0
    %v119 = vadd.f32 %v117, %v118
    %120 = vadd.xlane.f32.xlu0 %v119
    %v121 = vpop.xlane.xlu0 %120
    %v122 = vrot.slane %v121, 4
    %v123 = vadd.f32 %v121, %v122
    %v124 = vrot.slane %v123, 2
    %v125 = vadd.f32 %v123, %v124
    %v126 = vrot.slane %v125, 1
    %v127 = vadd.f32 %v125, %v126
    %s128 = vtos %v127
    %s129 = smul.f32 %s128, 0.03125
    %v130 = vsel %vm39, %v26, 0.0
    %v131 = vsel %vm39, %v27, 0.0
    %v132 = vadd.f32 %v130, %v131
    %v133 = vsel %vm39, %v28, 0.0
    %v134 = vadd.f32 %v132, %v133
    %v135 = vsel %vm39, %v29, 0.0
    %v136 = vadd.f32 %v134, %v135
    %v137 = vmul.f32 %v136, 0.25
    %v138 = vsel %vm39, %v137, -inf
    %139 = vmax.xlane.f32.xlu0 %v138
    %v140 = vpop.xlane.xlu0 %139
    %v141 = vsub.f32 %v137, %v140
    %v142 = vmul.f32 %v141, 1.442695
    %v143 = vpow.pop %v142
    %v144 = vsel %vm39, %v143, 0.0
    %145 = vadd.xlane.f32.xlu0 %v144
    %v146 = vpop.xlane.xlu0 %145
    %v147 = vlog2.pop %v146
    %v148 = vmul.f32 %v147, 0.6931472
    %v149 = vmul.f32 %v141, %v38
    %v150 = vsel %vm39, %v149, 0.0
    %151 = vadd.xlane.f32.xlu0 %v150
    %v152 = vpop.xlane.xlu0 %151
    %v153 = vsub.f32 %v148, %v152
    %v154 = vsel %vm112, %v153, 0.0
    %155 = vadd.xlane.f32.xlu0 %v154
    %v156 = vpop.xlane.xlu0 %155
    %v157 = vrot.slane %v156, 4
    %v158 = vadd.f32 %v156, %v157
    %v159 = vrot.slane %v158, 2
    %v160 = vadd.f32 %v158, %v159
    %v161 = vrot.slane %v160, 1
    %v162 = vadd.f32 %v160, %v161
    %s163 = vtos %v162
    %s164 = smul.f32 %s163, 0.125
    %s165 = smul.f32 %s164, %s164
    %v166 = vstv %s165
    %v167 = vrcp.pop %v166
    %s168 = vtos %v167
    %v169 = vstv %s168
    %v170 = vmul.f32 %v153, %v169
    %v171 = vsel %vm39, %v80, -inf
    %172 = vmax.xlane.f32.xlu0 %v171
    %v173 = vpop.xlane.xlu0 %172
    %v174 = vsel %vm39, %v81, -inf
    %175 = vmax.xlane.f32.xlu0 %v174
    %v176 = vpop.xlane.xlu0 %175
    %v177 = vsel %vm39, %v82, -inf
    %178 = vmax.xlane.f32.xlu0 %v177
    %v179 = vpop.xlane.xlu0 %178
    %v180 = vsel %vm39, %v83, -inf
    %181 = vmax.xlane.f32.xlu0 %v180
    %v182 = vpop.xlane.xlu0 %181
    %vm183 = vcmp.eq.f32.partialorder %v80, %v173
    %vm184 = vcmp.eq.f32.partialorder %v81, %v176
    %vm185 = vcmp.eq.f32.partialorder %v82, %v179
    %vm186 = vcmp.eq.f32.partialorder %v83, %v182
    %v187 = vsel %vm183, %v32, 16
    %v188 = vsel %vm184, %v32, 16
    %v189 = vsel %vm185, %v32, 16
    %v190 = vsel %vm186, %v32, 16
    %v191 = vsel %vm39, %v187, 2147483647
    %v192 = vand.u32 %v191, 65535
    %v193 = vshra.s32 %v191, 16
    %v194 = vcvt.s32.f32 %v192
    %v195 = vcvt.s32.f32 %v193
    %196 = vmin.xlane.f32.xlu0 %v195
    %v197 = vpop.xlane.xlu0 %196
    %vm198 = vcmp.eq.f32.partialorder %v195, %v197
    %v199 = vsel %vm198, %v194, inf
    %200 = vmin.xlane.f32.xlu0 %v199
    %v201 = vpop.xlane.xlu0 %200
    %v202 = vcvt.f32.s32 %v201
    %v203 = vcvt.f32.s32 %v197
    %v204 = vshll.u32 %v203, 16
    %v205 = vadd.s32 %v204, %v202
    %v206 = vsel %vm39, %v188, 2147483647
    %v207 = vand.u32 %v206, 65535
    %v208 = vshra.s32 %v206, 16
    %v209 = vcvt.s32.f32 %v207
    %v210 = vcvt.s32.f32 %v208
    %211 = vmin.xlane.f32.xlu0 %v210
    %v212 = vpop.xlane.xlu0 %211
    %vm213 = vcmp.eq.f32.partialorder %v210, %v212
    %v214 = vsel %vm213, %v209, inf
    %215 = vmin.xlane.f32.xlu0 %v214
    %v216 = vpop.xlane.xlu0 %215
    %v217 = vcvt.f32.s32 %v216
    %v218 = vcvt.f32.s32 %v212
    %v219 = vshll.u32 %v218, 16
    %v220 = vadd.s32 %v219, %v217
    %v221 = vsel %vm39, %v189, 2147483647
    %v222 = vand.u32 %v221, 65535
    %v223 = vshra.s32 %v221, 16
    %v224 = vcvt.s32.f32 %v222
    %v225 = vcvt.s32.f32 %v223
    %226 = vmin.xlane.f32.xlu0 %v225
    %v227 = vpop.xlane.xlu0 %226
    %vm228 = vcmp.eq.f32.partialorder %v225, %v227
    %v229 = vsel %vm228, %v224, inf
    %230 = vmin.xlane.f32.xlu0 %v229
    %v231 = vpop.xlane.xlu0 %230
    %v232 = vcvt.f32.s32 %v231
    %v233 = vcvt.f32.s32 %v227
    %v234 = vshll.u32 %v233, 16
    %v235 = vadd.s32 %v234, %v232
    %v236 = vsel %vm39, %v190, 2147483647
    %v237 = vand.u32 %v236, 65535
    %v238 = vshra.s32 %v236, 16
    %v239 = vcvt.s32.f32 %v237
    %v240 = vcvt.s32.f32 %v238
    %241 = vmin.xlane.f32.xlu0 %v240
    %v242 = vpop.xlane.xlu0 %241
    %vm243 = vcmp.eq.f32.partialorder %v240, %v242
    %v244 = vsel %vm243, %v239, inf
    %245 = vmin.xlane.f32.xlu0 %v244
    %v246 = vpop.xlane.xlu0 %245
    %v247 = vcvt.f32.s32 %v246
    %v248 = vcvt.f32.s32 %v242
    %v249 = vshll.u32 %v248, 16
    %v250 = vadd.s32 %v249, %v247
    %vm251 = vcmp.eq.s32.totalorder %v32, %v205
    %vm252 = vcmp.eq.s32.totalorder %v32, %v220
    %vm253 = vcmp.eq.s32.totalorder %v32, %v235
    %vm254 = vcmp.eq.s32.totalorder %v32, %v250
    %v255 = vsel %vm251, 1, 0
    %v256 = vsel %vm252, 1, 0
    %v257 = vsel %vm253, 1, 0
    %v258 = vsel %vm254, 1, 0
    %v259 = vcvt.s32.f32 %v255
    %v260 = vcvt.s32.f32 %v256
    %v261 = vcvt.s32.f32 %v257
    %v262 = vcvt.s32.f32 %v258
    %v263 = vmul.f32 %v259, %v80
    %v264 = vmul.f32 %v260, %v80
    %v265 = vmul.f32 %v261, %v80
    %v266 = vmul.f32 %v262, %v80
    %v267 = vsel %vm39, %v263, 0.0
    %268 = vadd.xlane.f32.xlu0 %v267
    %v269 = vpop.xlane.xlu0 %268
    %v270 = vsel %vm39, %v264, 0.0
    %271 = vadd.xlane.f32.xlu0 %v270
    %v272 = vpop.xlane.xlu0 %271
    %v273 = vsel %vm39, %v265, 0.0
    %274 = vadd.xlane.f32.xlu0 %v273
    %v275 = vpop.xlane.xlu0 %274
    %v276 = vsel %vm39, %v266, 0.0
    %277 = vadd.xlane.f32.xlu0 %v276
    %v278 = vpop.xlane.xlu0 %277
    %v279 = vmul.f32 %v173, %v269
    %v280 = vmul.f32 %v176, %v272
    %v281 = vmul.f32 %v179, %v275
    %v282 = vmul.f32 %v182, %v278
    %v283 = vadd.f32 %v173, %v269
    %v284 = vadd.f32 %v176, %v272
    %v285 = vadd.f32 %v179, %v275
    %v286 = vadd.f32 %v182, %v278
    %v287 = vadd.f32 %v279, %v279
    %v288 = vadd.f32 %v280, %v280
    %v289 = vadd.f32 %v281, %v281
    %v290 = vadd.f32 %v282, %v282
    %v291 = vsub.f32 %v283, %v287
    %v292 = vsub.f32 %v284, %v288
    %v293 = vsub.f32 %v285, %v289
    %v294 = vsub.f32 %v286, %v290
    %v295 = vadd.f32 %v291, 1e-09
    %v296 = vadd.f32 %v292, 1e-09
    %v297 = vadd.f32 %v293, 1e-09
    %v298 = vadd.f32 %v294, 1e-09
    %v299 = vlog2.pop %v295
    %v300 = vmul.f32 %v299, 0.6931472
    %v301 = vlog2.pop %v296
    %v302 = vmul.f32 %v301, 0.6931472
    %v303 = vlog2.pop %v297
    %v304 = vmul.f32 %v303, 0.6931472
    %v305 = vlog2.pop %v298
    %v306 = vmul.f32 %v305, 0.6931472
    %v307 = vsub.f32 0.0, %v300
    %v308 = vsub.f32 0.0, %v302
    %v309 = vsub.f32 0.0, %v304
    %v310 = vsub.f32 0.0, %v306
    %v311 = vadd.f32 %v307, %v308
    %v312 = vadd.f32 %v311, %v309
    %v313 = vadd.f32 %v312, %v310
    %v314 = vsub.f32 %v313, %v307
    %v315 = vmul.f32 %v314, 0.33333334
    %s316 = smul.f32 %s129, 0.5
    %v317 = vmul.f32 %v315, %v170
    %v318 = vsel %vm112, %v317, 0.0
    %319 = vadd.xlane.f32.xlu0 %v318
    %v320 = vpop.xlane.xlu0 %319
    %v321 = vrot.slane %v320, 4
    %v322 = vadd.f32 %v320, %v321
    %v323 = vrot.slane %v322, 2
    %v324 = vadd.f32 %v322, %v323
    %v325 = vrot.slane %v324, 1
    %v326 = vadd.f32 %v324, %v325
    %s327 = vtos %v326
    %s328 = smul.f32 %s327, 0.125
    %s329 = sadd.f32 %s316, %s328
    %s330 = scalar_lea.smem [#allocation5], 0
    %331 = sst [smem:[%s330]] %s329
    // Predicated region
    $region14: #{tpu_custom_call.1} parent=1 // pred_check
      _
    $region15: #{tpu_custom_call.1} parent=1 // pred_check_branch
      %333 = sbr.rel (0) target = $region17
    $region16: #{tpu_custom_call.1} parent=1 // pred_region
      %s335 = ssub.s32 16, 16
      %336 = vsyncadd [#allocation4], %s335
      %339 = dma.smem_to_hbm [#allocation5], 16, %s2, [#allocation4]
    $region17: #{tpu_custom_call.1} parent=1 // pred_fallthru
      _
    // Predicated region
    $region18: #{tpu_custom_call.1} parent=1 // pred_check
      _
    $region19: #{tpu_custom_call.1} parent=1 // pred_check_branch
      %341 = sbr.rel (0) target = $region21
    $region20: #{tpu_custom_call.1} parent=1 // pred_region
      %342 = dma.done [#allocation4], 16
    $region21: #{tpu_custom_call.1} parent=1 // pred_fallthru
      _
    %343 = sfence
    %344 = vsyncpa [#allocation3], 1
    %345 = vsyncpa [#allocation4], 1

</llo_original>
